<compile_context>
chip_gen: v7x
topology: tpu7x:2x2x1
jax: 0.10.0
libtpu: 0.0.40
codegen_flags: <defaults>
</compile_context>

<pallas_src>
import numpy as np
import jax
import jax.numpy as jnp
from jax.experimental import pallas as pl
from jax.experimental.pallas import tpu as pltpu


# --------------------------------------------------------------------------
# kernel: lane-dense broadcasted add
#   x_ref   : (bt, ft)  tile of the flattened activations
#   pos_ref : (1,  ft)  matching lane-slice of the positional table
#   o_ref   : (bt, ft)
# --------------------------------------------------------------------------
def _add_pos_kernel(x_ref, pos_ref, o_ref):
    o_ref[...] = x_ref[...] + pos_ref[...]      # (1, ft) broadcasts over rows


# --------------------------------------------------------------------------
# tile selection: bounded on BOTH axes, dtype-aware, megacore-friendly
# --------------------------------------------------------------------------
_DEFAULT_VMEM_BUDGET = 14 << 20   # total resident bytes; fits v5e's 16 MiB
                                  # default scoped VMEM (v6e/v7x default 32 MiB)
_LANE = 128


def _pick_tiles(batch, flat, itemsize, *,
                vmem_budget_bytes=_DEFAULT_VMEM_BUDGET,
                min_batch_steps=2):
    """Choose (bt, ft): batch (sublane) tile and flattened lane tile.

    Resident VMEM per grid step is modeled as
        2*bt*ft (x, double-buffered) + 2*bt*ft (out) + 2*8*ft (pos, padded
        to 8 sublanes, double-buffered), all times itemsize,
    and kept under `vmem_budget_bytes`.
    """
    sub = max(8, 32 // itemsize)      # sublane packing: 8 f32 / 16 bf16 / 32 int8

    def resident(bt, ft):
        return (4 * bt + 16) * ft * itemsize

    # Lane tile: full extent if even a minimal (sub-row) tile fits the budget,
    # otherwise the largest multiple of 128 that does (VMEM independent of S*D).
    if resident(sub, flat) <= vmem_budget_bytes:
        ft = flat
    else:
        ft = max(_LANE,
                 (vmem_budget_bytes // ((4 * sub + 16) * itemsize)) // _LANE * _LANE)

    # Batch tile: as many packed sublane groups as fit the remaining budget.
    rows = (vmem_budget_bytes // (ft * itemsize) - 16) // 4
    bt = max(sub, (rows // sub) * sub)
    if bt >= batch:
        bt = batch                    # full extent (allowed even if not /8)

    # v7x megacore: if the whole problem would be ONE grid step but the batch
    # is big enough to amortize the ~0.35 us/step overhead, split the batch so
    # the "parallel" grid axis has >= min_batch_steps steps to shard across
    # the 2 TensorCores.  Single-TC v5e/v6e: extra step is noise at >= 1 MiB.
    if (min_batch_steps > 1 and bt >= batch and ft >= flat
            and batch >= min_batch_steps * sub
            and batch * flat * itemsize >= (1 << 20)):
        bt = max(sub, ((pl.cdiv(batch, min_batch_steps) + sub - 1) // sub) * sub)

    return bt, ft


# --------------------------------------------------------------------------
# wrapper
# --------------------------------------------------------------------------
def positional_embedding_1d(x, pos_embedding, *,
                            vmem_budget_bytes=_DEFAULT_VMEM_BUDGET,
                            min_batch_steps=2):
    """x: (B, S, D); pos_embedding: (1, S, D) or (S, D).  Returns x + pos."""
    B, S, D = x.shape
    F = S * D
    pos = jnp.asarray(pos_embedding)
    if pos.size != F:
        raise ValueError(f"pos_embedding has {pos.size} elements, expected {F}")

    # Match torch's broadcast-add dtype promotion (e.g. bf16 + f32 -> f32).
    out_dtype = jnp.promote_types(x.dtype, pos.dtype)
    x2 = x.astype(out_dtype).reshape(B, F)          # lane-dense slab
    pos2 = pos.astype(out_dtype).reshape(1, F)
    itemsize = jnp.dtype(out_dtype).itemsize

    bt, ft = _pick_tiles(B, F, itemsize,
                         vmem_budget_bytes=vmem_budget_bytes,
                         min_batch_steps=min_batch_steps)
    grid = (pl.cdiv(B, bt), pl.cdiv(F, ft))         # partial blocks are masked

    out2 = pl.pallas_call(
        _add_pos_kernel,
        out_shape=jax.ShapeDtypeStruct((B, F), out_dtype),
        grid=grid,
        in_specs=[
            pl.BlockSpec((bt, ft), lambda i, j: (i, j)),   # activation tile
            pl.BlockSpec((1, ft), lambda i, j: (0, j)),    # pos, batch-invariant
        ],
        out_specs=pl.BlockSpec((bt, ft), lambda i, j: (i, j)),
        input_output_aliases={0: 0},                       # donate x into out
        cost_estimate=pl.CostEstimate(
            flops=B * F,
            transcendentals=0,
            bytes_accessed=(2 * B * F + F) * itemsize),
        compiler_params=pltpu.CompilerParams(
            dimension_semantics=("parallel", "parallel")),
    )(x2, pos2)
    return out2.reshape(B, S, D)


# --------------------------------------------------------------------------
# positional-table constructors matching the PyTorch module
# --------------------------------------------------------------------------
def learned_pos_embedding(seq_len, dim, key=None):
    """train=True path: a (1, S, D) parameter (zeros at init in PyTorch; an
    optional key fills it so the broadcasted add is actually exercised)."""
    if key is None:
        return jnp.zeros((1, seq_len, dim), jnp.float32)
    return jax.random.normal(key, (1, seq_len, dim), jnp.float32) * 0.02


def angle_pos_embedding(seq_len, dim):
    """train=False path: pos_embedding[pos, i] = pos / 10000^(2*(i//2)/dim)."""
    i = np.arange(dim)
    angles = 1.0 / np.power(10000.0, 2.0 * (i // 2) / float(dim))   # (D,)
    pos = np.arange(seq_len)[:, None].astype(np.float64)            # (S, 1)
    return jnp.asarray(pos * angles[None, :], jnp.float32)          # (S, D)


# --------------------------------------------------------------------------
if __name__ == "__main__":
    B, S, D = 2, 16, 32                     # (batch, seq_len, emb_dim)

    key = jax.random.PRNGKey(0)
    kx, kp, kb = jax.random.split(key, 3)
    x = jax.random.normal(kx, (B, S, D), jnp.float32)

    # train=False path (deterministic angle table, shape (S, D))
    pos_fixed = angle_pos_embedding(S, D)
    out_fixed = jax.block_until_ready(positional_embedding_1d(x, pos_fixed))
    ref_fixed = x + pos_fixed[None, :, :]
    np.testing.assert_allclose(np.asarray(out_fixed), np.asarray(ref_fixed),
                               atol=1e-6, rtol=1e-6)

    # train=True path (learned (1, S, D) parameter)
    pos_learned = learned_pos_embedding(S, D, key=kp)
    out_learned = jax.block_until_ready(positional_embedding_1d(x, pos_learned))
    np.testing.assert_allclose(np.asarray(out_learned),
                               np.asarray(x + pos_learned),
                               atol=1e-6, rtol=1e-6)

    # Non-divisible batch with a tiny VMEM budget: forces bt=8 -> grid (2, 1)
    # with a ragged last block, exercising partial-block masking + aliasing.
    Bb = 10
    xb = jax.random.normal(kb, (Bb, S, D), jnp.float32)
    out_part = jax.block_until_ready(
        positional_embedding_1d(xb, pos_fixed, vmem_budget_bytes=120_000))
    np.testing.assert_allclose(np.asarray(out_part),
                               np.asarray(xb + pos_fixed[None, :, :]),
                               atol=1e-6, rtol=1e-6)

    # Mixed-dtype promotion (bf16 x + f32 pos -> f32), matching torch.
    x_bf16 = x.astype(jnp.bfloat16)
    out_mix = jax.block_until_ready(positional_embedding_1d(x_bf16, pos_fixed))
    assert out_mix.dtype == jnp.float32
    np.testing.assert_allclose(
        np.asarray(out_mix),
        np.asarray(x_bf16.astype(jnp.float32) + pos_fixed[None, :, :]),
        atol=1e-6, rtol=1e-6)

    assert out_fixed.shape == (B, S, D) and out_learned.shape == (B, S, D)
    print("KERNEL_OK")
</pallas_src>

<mosaic_0001>
module attributes {stable_mosaic.version = 11 : i64} {
  func.func @_add_pos_kernel(%arg0: i32, %arg1: i32, %arg2: memref<2x512xf32, #tpu.memory_space<vmem>>, %arg3: memref<1x512xf32, #tpu.memory_space<vmem>>, %arg4: memref<2x512xf32, #tpu.memory_space<vmem>>) attributes {dimension_semantics = [#tpu.dimension_semantics<parallel>, #tpu.dimension_semantics<parallel>], iteration_bounds = array<i64: 1, 1>, scalar_prefetch = 0 : i64, scratch_operands = 0 : i64, tpu.core_type = #tpu.core_type<tc>, window_params = [{transform_indices = @transform_0, window_bounds = array<i64: 2, 512>}, {transform_indices = @transform_1, window_bounds = array<i64: 1, 512>}, {transform_indices = @transform_2, window_bounds = array<i64: 2, 512>}]} {
    %c0 = arith.constant 0 : index
    %c0_0 = arith.constant 0 : index
    %0 = vector.load %arg2[%c0, %c0_0] : memref<2x512xf32, #tpu.memory_space<vmem>>, vector<2x512xf32>
    %c0_1 = arith.constant 0 : index
    %c0_2 = arith.constant 0 : index
    %1 = vector.load %arg3[%c0_1, %c0_2] : memref<1x512xf32, #tpu.memory_space<vmem>>, vector<1x512xf32>
    %2 = vector.broadcast %1 : vector<1x512xf32> to vector<2x512xf32>
    %3 = arith.addf %0, %2 : vector<2x512xf32>
    %c0_3 = arith.constant 0 : index
    %c0_4 = arith.constant 0 : index
    %4 = vector.load %arg4[%c0_3, %c0_4] : memref<2x512xf32, #tpu.memory_space<vmem>>, vector<2x512xf32>
    tpu.vector_store %arg4[%c0_3, %c0_4], %3 {strides = array<i32>} : memref<2x512xf32, #tpu.memory_space<vmem>>, vector<2x512xf32>,
    return
  }
  func.func @transform_0(%arg0: i32, %arg1: i32) -> (i32, i32) {
    %c0_i32 = arith.constant 0 : i32
    return %arg0, %arg1 : i32, i32
  }
  func.func @transform_1(%arg0: i32, %arg1: i32) -> (i32, i32) {
    %c0_i32 = arith.constant 0 : i32
    %c0_i32_0 = arith.constant 0 : i32
    return %c0_i32, %arg1 : i32, i32
  }
  func.func @transform_2(%arg0: i32, %arg1: i32) -> (i32, i32) {
    %c0_i32 = arith.constant 0 : i32
    return %arg0, %arg1 : i32, i32
  }
}

</mosaic_0001>

<llo_original>
// kernel: tpu_custom_call.1
$region0: #{tpu_custom_call.1}
  #allocation0 [shape = 'u32[]', space=smem, size = 0x4, offset = 0x4, fixed_abs, tag = 'smem constant byte address 0x4 - core index']
  #allocation1 [shape = 'u32[144,128]{1,0:T(1,128)}', space=vmem, size = 0x12000, scoped, tag = 'internal scratch']
  %s0 = inlined_call_operand.hbm [shape: f32[2,512], index: 0, kind: input, shape index: {}, may-alias: {0,2}]
  %s1 = inlined_call_operand.vmem [shape: f32[1,512], index: 1, kind: input, shape index: {}]
  %s2 = inlined_call_operand.hbm [shape: f32[2,512], index: 2, kind: output, shape index: {}, may-alias: {0,2}]
  %s3 = sld [smem:[#allocation0]]
  $region22: #{tpu_custom_call.1} parent=0
    _
  %s5 = ssub.s32 1, %s3
  %s6 = scalar_select 0, %s5, %s3
  $region1: #{tpu_custom_call.1} parent=0
    #allocation2 [shape = 'u8[4096]{0}', space=vmem, size = 0x1000, scoped, tag = 'input window, operand 0, single buffered']
    #allocation3 [shape = 's32[1]{0}', space=sflag, size = 0x4, scoped, tag = 'scoped memory for tpu_custom_call.1']
    #allocation4 [shape = 's32[1]{0}', space=sflag, size = 0x4, scoped, tag = 'scoped memory for tpu_custom_call.1']
    #allocation5 [shape = 'u8[4096]{0}', space=vmem, size = 0x1000, scoped, tag = 'output window, operand 0, single buffered']
    %7 = vsyncpa [#allocation3], 0
    %8 = vsyncpa [#allocation4], 0
    // Predicated region
    $region2: #{tpu_custom_call.1} parent=1 // pred_check
      _
    $region3: #{tpu_custom_call.1} parent=1 // pred_check_branch
      %10 = sbr.rel (0) target = $region5
    $region4: #{tpu_custom_call.1} parent=1 // pred_region
      %s12 = ssub.s32 128, 128
      %13 = vsyncadd [#allocation3], %s12
      %s15 = sshll.u32 [#allocation2], 4
      %s16 = int_to_ptr.vmem [resolvable:$true] %s15
      %18 = dma.hbm_to_vmem [thread:$0]  %s0, 128, %s16, [#allocation3]
    $region5: #{tpu_custom_call.1} parent=1 // pred_fallthru
      _
    // Predicated region
    $region6: #{tpu_custom_call.1} parent=1 // pred_check
      _
    $region7: #{tpu_custom_call.1} parent=1 // pred_check_branch
      %20 = sbr.rel (0) target = $region9
    $region8: #{tpu_custom_call.1} parent=1 // pred_region
      _
    $region9: #{tpu_custom_call.1} parent=1 // pred_fallthru
      _
    // Predicated region
    $region10: #{tpu_custom_call.1} parent=1 // pred_check
      _
    $region11: #{tpu_custom_call.1} parent=1 // pred_check_branch
      %22 = sbr.rel (0) target = $region13
    $region12: #{tpu_custom_call.1} parent=1 // pred_region
      %23 = dma.done [#allocation3], 128
    $region13: #{tpu_custom_call.1} parent=1 // pred_fallthru
      _
    %v24 = vld [vmem:[#allocation2] sm:$0xff]
    %v25 = vld [vmem:[%s1] sm:$0xf]
    %v27 = vlaneseq
    %v28 = vshrl.u32 %v27, 7
    %v29 = vsub.s32 0, %v28
    %v30 = vrot.slane %v25, %v29
    %v31 = vlaneseq
    %v32 = vshrl.u32 %v31, 7
    %v33 = vsub.s32 1, %v32
    %v34 = vrot.slane %v25, %v33
    %v35 = vlaneseq
    %v36 = vshrl.u32 %v35, 7
    %v37 = vsub.s32 2, %v36
    %v38 = vrot.slane %v25, %v37
    %v39 = vlaneseq
    %v40 = vshrl.u32 %v39, 7
    %v41 = vsub.s32 3, %v40
    %v42 = vrot.slane %v25, %v41
    %v43 = vcombine.low %v30, %v34
    %v44 = vcombine.low %v38, %v42
    %v46 = vunpack.c.l.s4 1983009808
    %v47 = vunpack.c.0.s8 %v46
    %v48 = vlaneseq
    %v49 = vshrl.u32 %v48, 7
    %v50 = vsub.s32 %v47, %v49
    %v51 = vrot.slane %v43, %v50
    %v53 = vunpack.c.l.s4 1983009808
    %v54 = vunpack.c.0.s8 %v53
    %v55 = vlaneseq
    %v56 = vshrl.u32 %v55, 7
    %v57 = vsub.s32 %v54, %v56
    %v58 = vrot.slane %v44, %v57
    %v59 = vcombine.low %v51, %v58
    %v61 = vadd.f32 %v24, %v59
    %62 = vst [vmem:[#allocation5] sm:$0xff] %v61
    // Predicated region
    $region14: #{tpu_custom_call.1} parent=1 // pred_check
      _
    $region15: #{tpu_custom_call.1} parent=1 // pred_check_branch
      %64 = sbr.rel (0) target = $region17
    $region16: #{tpu_custom_call.1} parent=1 // pred_region
      %s66 = ssub.s32 128, 128
      %67 = vsyncadd [#allocation4], %s66
      %s69 = sshll.u32 [#allocation5], 4
      %s70 = int_to_ptr.vmem [resolvable:$true] %s69
      %72 = dma.vmem_to_hbm [thread:$0]  %s70, 128, %s2, [#allocation4]
    $region17: #{tpu_custom_call.1} parent=1 // pred_fallthru
      _
    // Predicated region
    $region18: #{tpu_custom_call.1} parent=1 // pred_check
      _
    $region19: #{tpu_custom_call.1} parent=1 // pred_check_branch
      %74 = sbr.rel (0) target = $region21
    $region20: #{tpu_custom_call.1} parent=1 // pred_region
      %75 = dma.done [#allocation4], 128
    $region21: #{tpu_custom_call.1} parent=1 // pred_fallthru
      _
    %76 = vsyncpa [#allocation3], 1
    %77 = vsyncpa [#allocation4], 1

</llo_original>
